<compile_context>
chip_gen: v5e
topology: v5e:2x2
jax: 0.10.0
libtpu: 0.0.40
codegen_flags: <defaults>
</compile_context>

<pallas_src>
import functools

import jax
import jax.numpy as jnp
from jax import lax
from jax.experimental import pallas as pl
from jax.experimental.pallas import tpu as pltpu

LN_EPS = 1e-6                    # VisionTransformerTeacher uses LayerNorm(eps=1e-6)
MATMUL_DTYPE = jnp.bfloat16      # MXU input dtype for the big matmuls (f32 accumulation)
XN_DTYPE = jnp.bfloat16          # dtype of norm1(x) between the two kernels
GELU_APPROX = False              # True -> tanh GELU (EUP) if the erf polynomial binds on v6e
_NEG_INF = -1e30                 # softmax mask value for padded token rows


@functools.lru_cache(maxsize=None)
def _vmem_limit_bytes():
    """Per-generation scoped-VMEM budget (~0.7 of physical: ~45 MiB v7x, ~90 MiB v5e/v6e)."""
    cap = 64 * 1024 * 1024
    try:
        cap = int(getattr(pltpu.get_tpu_info(), "vmem_capacity_bytes", cap))
    except Exception:
        pass
    return int(cap * 0.7)


def _resident_spec(shape, grid_rank):
    """BlockSpec for an operand whose block index never changes (weights / biases).

    The constant index map means Pallas only DMAs it once; Buffered(1) drops the second
    (never-used) pipeline copy so large weights don't eat double VMEM (v7x: 64 MiB)."""
    zeros = (0,) * len(shape)
    if grid_rank == 1:
        index_map = lambda b: zeros
    else:
        index_map = lambda b, t: zeros
    return pl.BlockSpec(shape, index_map, pipeline_mode=pl.Buffered(1))


def _choose_row_tiling(n, row_tile=None):
    """Pick an MLP row tile (multiple of 8, <=128) and the padded token count.
    197 -> (104, 208); already-aligned n gets zero padding."""
    if row_tile is not None:
        tn = int(row_tile)
        assert tn > 0 and tn % 8 == 0, row_tile
        return tn, pl.cdiv(n, tn) * tn
    best = None
    for tiles in range(1, 64):
        tn = pl.cdiv(n, 8 * tiles) * 8
        if tn > 128:
            continue
        n_pad = tn * tiles
        key = (n_pad - n, -tn)               # least padding first, then biggest tile
        if best is None or key < best[0]:
            best = (key, tn, n_pad)
    assert best is not None, n
    return best[1], best[2]


# ----------------- fused LayerNorm1 + CLS-query selection kernel -----------------
def _ln_selection_kernel(x_ref, g_ref, b_ref, wq_ref, bq_ref, wk_ref, bk_ref,
                         wv_ref, bv_ref, hsum_ref, xn_ref, sel_ref, *, scale, n_valid):
    x = x_ref[0].astype(jnp.float32)                               # [Np, C]
    Np, C = x.shape

    # LayerNorm1 (biased variance, matches nn.LayerNorm)
    mu = jnp.mean(x, axis=1, keepdims=True)
    xc = x - mu
    var = jnp.mean(xc * xc, axis=1, keepdims=True)
    xn = xc * lax.rsqrt(var + LN_EPS) * g_ref[...] + b_ref[...]    # [Np, C] f32
    xn_ref[0] = xn.astype(xn_ref.dtype)

    # ---- CLS-query per-head logits with the k-projection folded away ----
    #   s[j,h] = sum_{c in head h} (xn_j . Wk_c + bk_c) * q_cls_c
    #          = (xn @ Wsel)[j,h] + bsel[h]
    # Only the CLS row of q is ever used -> [1,C] matmul; logits kept in f32 (tiny).
    q_cls = (jnp.dot(xn[0:1, :], wq_ref[...],
                     preferred_element_type=jnp.float32) + bq_ref[...]) * scale   # [1, C]
    wsel = jnp.dot(wk_ref[...] * q_cls, hsum_ref[...],
                   preferred_element_type=jnp.float32)             # [C, H]
    bsel = jnp.dot(bk_ref[...] * q_cls, hsum_ref[...],
                   preferred_element_type=jnp.float32)             # [1, H]
    s = jnp.dot(xn, wsel, preferred_element_type=jnp.float32) + bsel   # [Np, H]

    # mask pad rows so they get zero probability mass
    valid = lax.broadcasted_iota(jnp.int32, (Np, 1), 0) < n_valid
    s = jnp.where(valid, s, _NEG_INF)

    # softmax over tokens, independently per head (columns)
    m = jnp.max(s, axis=0, keepdims=True)
    e = jnp.exp(s - m)
    p = e / jnp.sum(e, axis=0, keepdims=True)                      # [Np, H]

    # v projection (bf16 MXU inputs, f32 accumulation) — only its L2 norm is needed
    v = jnp.dot(xn.astype(wv_ref.dtype), wv_ref[...],
                preferred_element_type=jnp.float32) + bv_ref[...]  # [Np, C]

    # lane-dense [1, Np] outputs via tiny A @ B^T contractions
    H = p.shape[1]
    dn = (((1,), (1,)), ((), ()))                                  # A @ B^T
    score = lax.dot_general(jnp.ones((1, H), jnp.float32), p, dn,
                            preferred_element_type=jnp.float32)    # [1, Np]
    vsq = lax.dot_general(jnp.ones((1, C), jnp.float32), v * v, dn,
                          preferred_element_type=jnp.float32)      # [1, Np]
    sel_ref[0] = score * jnp.sqrt(vsq)     # sum_h softmax * ||v_j||_2, lane-dense


def ln_selection(x_pad, g1, b1, wq, bq, wk, bk, wv, bv, head_ones, *, scale, n_valid):
    """Returns (xn [B,Np,C] XN_DTYPE, selection_score [B,Np] f32)."""
    B, Np, C = x_pad.shape
    H = head_ones.shape[1]
    kern = functools.partial(_ln_selection_kernel, scale=scale, n_valid=n_valid)
    # NOTE: grid is (B,) — the CLS-query softmax needs all tokens.  For B==1 inference
    # on a 2-TC part an N-split with running max/sum accumulators would restore the
    # second core; at B>=2 each core already gets whole-image steps.
    xn, sel = pl.pallas_call(
        kern,
        out_shape=(jax.ShapeDtypeStruct((B, Np, C), XN_DTYPE),
                   jax.ShapeDtypeStruct((B, 1, Np), jnp.float32)),
        grid_spec=pltpu.PrefetchScalarGridSpec(
            num_scalar_prefetch=0,
            grid=(B,),
            in_specs=[
                pl.BlockSpec((1, Np, C), lambda b: (b, 0, 0)),
                _resident_spec((1, C), 1),     # g1
                _resident_spec((1, C), 1),     # b1
                _resident_spec((C, C), 1),     # Wq  (f32: feeds a sort)
                _resident_spec((1, C), 1),     # bq
                _resident_spec((C, C), 1),     # Wk  (f32)
                _resident_spec((1, C), 1),     # bk
                _resident_spec((C, C), 1),     # Wv  (MATMUL_DTYPE)
                _resident_spec((1, C), 1),     # bv
                _resident_spec((C, H), 1),     # block-diag head-sum matrix
            ],
            out_specs=[
                pl.BlockSpec((1, Np, C), lambda b: (b, 0, 0)),
                pl.BlockSpec((1, 1, Np), lambda b: (b, 0, 0)),
            ],
        ),
        compiler_params=pltpu.CompilerParams(
            dimension_semantics=("parallel",),
            vmem_limit_bytes=_vmem_limit_bytes()),
    )(x_pad, g1, b1, wq, bq, wk, bk, wv, bv, head_ones)
    return xn, sel[:, 0, :]


# ------- fused (token gather + residual + LayerNorm2 + MLP + residual) kernel -------
def _gather_mlp_kernel(idx_ref, x_ref, xn_ref, g_ref, b_ref, w1_ref, b1_ref,
                       w2_ref, b2_ref, selx_ref, o_ref):
    tn = idx_ref.shape[1]
    Np = x_ref.shape[1]

    # ---- token gather as a one-hot matmul (no dynamic indexing, MXU friendly) ----
    # The raw f32 rows are reproduced to <=1 ulp by splitting the slab into three bf16
    # planes with hi+mid+lo == slab and summing three bf16 matmuls against the
    # (exactly representable) one-hot.
    onehot = (lax.broadcasted_iota(jnp.int32, (tn, Np), 1)
              == idx_ref[0]).astype(jnp.bfloat16)                  # [tn, Np]
    slab = x_ref[0].astype(jnp.float32)                            # [Np, C] raw tokens
    hi = slab.astype(jnp.bfloat16)
    r1 = slab - hi.astype(jnp.float32)
    mid = r1.astype(jnp.bfloat16)
    lo = (r1 - mid.astype(jnp.float32)).astype(jnp.bfloat16)
    sel = (jnp.dot(onehot, hi, preferred_element_type=jnp.float32)
           + jnp.dot(onehot, mid, preferred_element_type=jnp.float32)
           + jnp.dot(onehot, lo, preferred_element_type=jnp.float32))   # [tn, C]
    selx_ref[0] = sel.astype(selx_ref.dtype)

    # ---- fused residual + LN2 + fc1 + GELU + fc2 + residual ----
    xr = sel + xn_ref[0].astype(jnp.float32)                       # selected_x + norm1(x)
    mu = jnp.mean(xr, axis=1, keepdims=True)
    xc = xr - mu
    var = jnp.mean(xc * xc, axis=1, keepdims=True)
    ln = xc * lax.rsqrt(var + LN_EPS) * g_ref[...] + b_ref[...]
    h = jnp.dot(ln.astype(w1_ref.dtype), w1_ref[...],
                preferred_element_type=jnp.float32) + b1_ref[...]
    h = jax.nn.gelu(h, approximate=GELU_APPROX)                    # exact erf == nn.GELU()
    y = jnp.dot(h.astype(w2_ref.dtype), w2_ref[...],
                preferred_element_type=jnp.float32) + b2_ref[...]
    o_ref[0] = (xr + y).astype(o_ref.dtype)                        # second residual fused


def gather_mlp_block(sel_idx, x_pad, xn, g2, b2, w1_t, b1_fc, w2_t, b2_fc, *, row_tile):
    B, Np, C = x_pad.shape
    Hd = w1_t.shape[1]
    tn = row_tile
    assert Np % tn == 0 and tn % 8 == 0, (Np, tn)
    grid = (B, Np // tn)
    selx, out = pl.pallas_call(
        _gather_mlp_kernel,
        out_shape=(jax.ShapeDtypeStruct((B, Np, C), x_pad.dtype),    # selected_x
                   jax.ShapeDtypeStruct((B, Np, C), x_pad.dtype)),   # block output
        grid_spec=pltpu.PrefetchScalarGridSpec(
            num_scalar_prefetch=0,
            grid=grid,
            in_specs=[
                pl.BlockSpec((1, tn, 1), lambda b, t: (b, t, 0)),    # gather indices
                pl.BlockSpec((1, Np, C), lambda b, t: (b, 0, 0)),    # raw-x slab, per-b resident
                pl.BlockSpec((1, tn, C), lambda b, t: (b, t, 0)),    # xn tile
                _resident_spec((1, C), 2),      # g2
                _resident_spec((1, C), 2),      # b2
                _resident_spec((C, Hd), 2),     # fc1 weight (transposed, MATMUL_DTYPE)
                _resident_spec((1, Hd), 2),     # fc1 bias
                _resident_spec((Hd, C), 2),     # fc2 weight
                _resident_spec((1, C), 2),      # fc2 bias
            ],
            out_specs=[
                pl.BlockSpec((1, tn, C), lambda b, t: (b, t, 0)),
                pl.BlockSpec((1, tn, C), lambda b, t: (b, t, 0)),
            ],
        ),
        compiler_params=pltpu.CompilerParams(
            dimension_semantics=("parallel", "parallel"),
            vmem_limit_bytes=_vmem_limit_bytes()),
    )(sel_idx, x_pad, xn, g2, b2, w1_t, b1_fc, w2_t, b2_fc)
    return selx, out


# --------------------------------- ATSBlock forward -------------------------------
def ats_block_forward(x, params, num_heads, n=197, policy=None):
    """x: [B, N, C] float32.  Returns (x_new, selected_x, None, policy).
    (`n` is overwritten to N inside the reference forward, so it is unused here.)"""
    B, N, C = x.shape
    scale = (C // num_heads) ** -0.5

    # shape hygiene: pad tokens to a multiple of the MLP row tile (e.g. 197 -> 208)
    tn, Np = _choose_row_tiling(N, params.get("row_tile"))
    x_pad = x if Np == N else jnp.pad(x, ((0, 0), (0, Np - N), (0, 0)))

    # kernel 1: LayerNorm1 + CLS-query selection scores (pad rows masked in-softmax)
    xn, sel_full = ln_selection(
        x_pad, params["g1"], params["b1"],
        params["wq"], params["bq"], params["wk"], params["bk"],
        params["wv"], params["bv"], params["head_ones"],
        scale=scale, n_valid=N)

    # ---- adaptive token sampling (data-dependent sort / cdf / nearest-index on tiny
    #      [B, N-1] data: plain JAX glue — no clean single-kernel Pallas equivalent) ----
    M = N - 1
    sel = sel_full[:, 1:N]                                          # drop CLS, drop pads
    # NOTE: both divisions below are unguarded in the PyTorch reference (all-equal
    # post-CLS scores would produce inf/nan there too); kept verbatim.
    sel = sel / jnp.sum(sel, axis=1, keepdims=True)
    sorted_ind = jnp.argsort(sel, axis=1)                           # ascending
    sorted_scores = jnp.take_along_axis(sel, sorted_ind, axis=1)
    cdf = jnp.cumsum(sorted_scores, axis=1)
    cmin = jnp.min(cdf, axis=1, keepdims=True)
    cmax = jnp.max(cdf, axis=1, keepdims=True)
    norm_cdf = (cdf - cmin) / (cmax - cmin)                         # [B, M], monotone
    ys = params["ys"][0, :M]

    # argmin_j |ys_i - norm_cdf_j| via searchsorted on the monotone cdf (O(N log N));
    # matches the reference argmin except for ties between exactly-duplicate cdf values.
    pos = jax.vmap(lambda a: jnp.searchsorted(a, ys, side="left"))(norm_cdf)
    lo = jnp.clip(pos - 1, 0, M - 1)
    hi = jnp.clip(pos, 0, M - 1)
    d_lo = jnp.abs(ys[None, :] - jnp.take_along_axis(norm_cdf, lo, axis=1))
    d_hi = jnp.abs(ys[None, :] - jnp.take_along_axis(norm_cdf, hi, axis=1))
    tokens_to_pick_ind = jnp.where(d_lo <= d_hi, lo, hi)            # [B, M]

    # compose the two reference gathers into one raw-token index (+1 skips the CLS row,
    # which is always kept as row 0); pad rows re-gather CLS and are sliced off below.
    final_idx = jnp.take_along_axis(sorted_ind, tokens_to_pick_ind, axis=1) + 1
    idx_full = jnp.concatenate(
        [jnp.zeros((B, 1), jnp.int32), final_idx.astype(jnp.int32)], axis=1)   # [B, N]
    if Np > N:
        idx_full = jnp.pad(idx_full, ((0, 0), (0, Np - N)))
    sel_idx = idx_full[:, :, None]                                  # [B, Np, 1]

    # kernel 2: in-kernel gather -> (selected_x + xn) -> LN2 -> fc1 -> GELU -> fc2 -> +res
    selx_pad, out_pad = gather_mlp_block(
        sel_idx, x_pad, xn, params["g2"], params["b2"],
        params["w1_t"], params["b1_fc"], params["w2_t"], params["b2_fc"],
        row_tile=tn)

    return out_pad[:, :N], selx_pad[:, :N], None, policy


# --------------------------------------- main --------------------------------------
if __name__ == "__main__":
    B, N, C = 2, 13, 32          # N=13 deliberately exercises the pad-to-16 + mask path
    num_heads = 4
    hd = C // num_heads
    mlp_hidden = int(C * 4.0)

    key = jax.random.PRNGKey(0)
    k = jax.random.split(key, 8)
    x = jax.random.normal(k[0], (B, N, C), dtype=jnp.float32)

    # attn.proj_q_selector.qkv : Linear(C, 3C), torch layout weight [3C, C], bias [3C]
    wqkv = 0.02 * jax.random.normal(k[1], (3 * C, C), jnp.float32)
    bqkv = 0.02 * jax.random.normal(k[2], (3 * C,), jnp.float32)
    wqkv_t = wqkv.T                                        # [C, 3C] = [ q | k | v ] columns
    # block-diagonal head-sum matrix for the per-head logit reduction on the MXU
    head_ids = jnp.arange(C, dtype=jnp.int32) // hd
    head_ones = (head_ids[:, None] ==
                 jnp.arange(num_heads, dtype=jnp.int32)[None, :]).astype(jnp.float32)

    params = {
        # norm1 / norm2 (PyTorch init: weight=1, bias=0)
        "g1": jnp.ones((1, C), jnp.float32),
        "b1": jnp.zeros((1, C), jnp.float32),
        "g2": jnp.ones((1, C), jnp.float32),
        "b2": jnp.zeros((1, C), jnp.float32),
        # selection projections: q/k stay f32 (logits feed a sort -> precision matters),
        # v only feeds a norm -> stored in MATMUL_DTYPE
        "wq": wqkv_t[:, :C],
        "wk": wqkv_t[:, C:2 * C],
        "wv": wqkv_t[:, 2 * C:].astype(MATMUL_DTYPE),
        "bq": bqkv[None, :C],
        "bk": bqkv[None, C:2 * C],
        "bv": bqkv[None, 2 * C:],
        "head_ones": head_ones,                            # [C, H]
        # mlp.fc1 / fc2 ; stored transposed, bf16 in HBM (set MATMUL_DTYPE/XN_DTYPE to
        # float32 to bit-tighten against the fp32 torch reference)
        "w1_t": (0.02 * jax.random.normal(k[3], (mlp_hidden, C), jnp.float32)
                 ).T.astype(MATMUL_DTYPE),
        "b1_fc": 0.02 * jax.random.normal(k[4], (1, mlp_hidden), jnp.float32),
        "w2_t": (0.02 * jax.random.normal(k[5], (C, mlp_hidden), jnp.float32)
                 ).T.astype(MATMUL_DTYPE),
        "b2_fc": 0.02 * jax.random.normal(k[6], (1, C), jnp.float32),
        # QuerySelector.ys parameter: linspace(0, 1, 196)[None, :]
        "ys": jnp.linspace(0.0, 1.0, 196, dtype=jnp.float32)[None, :],
        # demo-only: force 8-row tiles so the (B, Np/tn) MLP grid has >1 token step
        "row_tile": 8,
        # TODO(synk): QuerySelector.bin_sizes / mask_generation are dead code in this
        # forward path and are not materialized.
    }

    out, top_tokens, masks, policy = ats_block_forward(x, params, num_heads,
                                                       n=197, policy=None)
    jax.block_until_ready(out)
    jax.block_until_ready(top_tokens)
    assert out.shape == (B, N, C) and top_tokens.shape == (B, N, C)
    assert masks is None and policy is None
    assert bool(jnp.all(jnp.isfinite(out))) and bool(jnp.all(jnp.isfinite(top_tokens)))
    print("KERNEL_OK")
</pallas_src>

<mosaic_0001>
module attributes {stable_mosaic.version = 11 : i64} {
  func.func @_ln_selection_kernel(%arg0: i32, %arg1: memref<1x16x32xf32, #tpu.memory_space<vmem>>, %arg2: memref<1x32xf32, #tpu.memory_space<vmem>>, %arg3: memref<1x32xf32, #tpu.memory_space<vmem>>, %arg4: memref<32x32xf32, #tpu.memory_space<vmem>>, %arg5: memref<1x32xf32, #tpu.memory_space<vmem>>, %arg6: memref<32x32xf32, #tpu.memory_space<vmem>>, %arg7: memref<1x32xf32, #tpu.memory_space<vmem>>, %arg8: memref<32x32xbf16, #tpu.memory_space<vmem>>, %arg9: memref<1x32xf32, #tpu.memory_space<vmem>>, %arg10: memref<32x4xf32, #tpu.memory_space<vmem>>, %arg11: memref<1x16x32xbf16, #tpu.memory_space<vmem>>, %arg12: memref<1x1x16xf32, #tpu.memory_space<vmem>>) attributes {dimension_semantics = [#tpu.dimension_semantics<parallel>], iteration_bounds = array<i64: 2>, scalar_prefetch = 0 : i64, scratch_operands = 0 : i64, tpu.core_type = #tpu.core_type<tc>, window_params = [{transform_indices = @transform_0, window_bounds = array<i64: 1, 16, 32>}, {pipeline_mode = #tpu.pipeline_mode<synchronous>, transform_indices = @transform_1, window_bounds = array<i64: 1, 32>}, {pipeline_mode = #tpu.pipeline_mode<synchronous>, transform_indices = @transform_2, window_bounds = array<i64: 1, 32>}, {pipeline_mode = #tpu.pipeline_mode<synchronous>, transform_indices = @transform_3, window_bounds = array<i64: 32, 32>}, {pipeline_mode = #tpu.pipeline_mode<synchronous>, transform_indices = @transform_4, window_bounds = array<i64: 1, 32>}, {pipeline_mode = #tpu.pipeline_mode<synchronous>, transform_indices = @transform_5, window_bounds = array<i64: 32, 32>}, {pipeline_mode = #tpu.pipeline_mode<synchronous>, transform_indices = @transform_6, window_bounds = array<i64: 1, 32>}, {pipeline_mode = #tpu.pipeline_mode<synchronous>, transform_indices = @transform_7, window_bounds = array<i64: 32, 32>}, {pipeline_mode = #tpu.pipeline_mode<synchronous>, transform_indices = @transform_8, window_bounds = array<i64: 1, 32>}, {pipeline_mode = #tpu.pipeline_mode<synchronous>, transform_indices = @transform_9, window_bounds = array<i64: 32, 4>}, {transform_indices = @transform_10, window_bounds = array<i64: 1, 16, 32>}, {transform_indices = @transform_11, window_bounds = array<i64: 1, 1, 16>}]} {
    %c0 = arith.constant 0 : index
    %c0_0 = arith.constant 0 : index
    %c0_1 = arith.constant 0 : index
    %0 = vector.load %arg1[%c0, %c0_0, %c0_1] : memref<1x16x32xf32, #tpu.memory_space<vmem>>, vector<1x16x32xf32>
    %1 = vector.shape_cast %0 : vector<1x16x32xf32> to vector<16x32xf32>
    %cst = arith.constant dense<0.000000e+00> : vector<16xf32>
    %2 = vector.multi_reduction <add>, %1, %cst [1] : vector<16x32xf32> to vector<16xf32>
    %3 = vector.shape_cast %2 : vector<16xf32> to vector<16x1xf32>
    %cst_2 = arith.constant 3.200000e+01 : f32
    %4 = vector.broadcast %cst_2 : f32 to vector<16x1xf32>
    %5 = arith.divf %3, %4 : vector<16x1xf32>
    %6 = vector.broadcast %5 : vector<16x1xf32> to vector<16x32xf32>
    %7 = arith.subf %1, %6 : vector<16x32xf32>
    %8 = arith.mulf %7, %7 : vector<16x32xf32>
    %cst_3 = arith.constant dense<0.000000e+00> : vector<16xf32>
    %9 = vector.multi_reduction <add>, %8, %cst_3 [1] : vector<16x32xf32> to vector<16xf32>
    %10 = vector.shape_cast %9 : vector<16xf32> to vector<16x1xf32>
    %cst_4 = arith.constant 3.200000e+01 : f32
    %11 = vector.broadcast %cst_4 : f32 to vector<16x1xf32>
    %12 = arith.divf %10, %11 : vector<16x1xf32>
    %cst_5 = arith.constant 9.99999997E-7 : f32
    %13 = vector.broadcast %cst_5 : f32 to vector<16x1xf32>
    %14 = arith.addf %12, %13 : vector<16x1xf32>
    %15 = math.rsqrt %14 : vector<16x1xf32>
    %16 = vector.broadcast %15 : vector<16x1xf32> to vector<16x32xf32>
    %17 = arith.mulf %7, %16 : vector<16x32xf32>
    %c0_6 = arith.constant 0 : index
    %c0_7 = arith.constant 0 : index
    %18 = vector.load %arg2[%c0_6, %c0_7] : memref<1x32xf32, #tpu.memory_space<vmem>>, vector<1x32xf32>
    %19 = vector.broadcast %18 : vector<1x32xf32> to vector<16x32xf32>
    %20 = arith.mulf %17, %19 : vector<16x32xf32>
    %c0_8 = arith.constant 0 : index
    %c0_9 = arith.constant 0 : index
    %21 = vector.load %arg3[%c0_8, %c0_9] : memref<1x32xf32, #tpu.memory_space<vmem>>, vector<1x32xf32>
    %22 = vector.broadcast %21 : vector<1x32xf32> to vector<16x32xf32>
    %23 = arith.addf %20, %22 : vector<16x32xf32>
    %24 = arith.truncf %23 : vector<16x32xf32> to vector<16x32xbf16>
    %c0_10 = arith.constant 0 : index
    %c0_11 = arith.constant 0 : index
    %c0_12 = arith.constant 0 : index
    %25 = vector.load %arg11[%c0_10, %c0_11, %c0_12] : memref<1x16x32xbf16, #tpu.memory_space<vmem>>, vector<1x16x32xbf16>
    %26 = vector.shape_cast %25 : vector<1x16x32xbf16> to vector<16x32xbf16>
    %27 = vector.shape_cast %24 : vector<16x32xbf16> to vector<1x16x32xbf16>
    tpu.vector_store %arg11[%c0_10, %c0_11, %c0_12], %27 {strides = array<i32>} : memref<1x16x32xbf16, #tpu.memory_space<vmem>>, vector<1x16x32xbf16>,
    %28 = vector.extract_strided_slice %23 {offsets = [0, 0], sizes = [1, 32], strides = [1, 1]} : vector<16x32xf32> to vector<1x32xf32>
    %c0_13 = arith.constant 0 : index
    %c0_14 = arith.constant 0 : index
    %29 = vector.load %arg4[%c0_13, %c0_14] : memref<32x32xf32, #tpu.memory_space<vmem>>, vector<32x32xf32>
    %cst_15 = arith.constant dense<0.000000e+00> : vector<1x32xf32>
    %30 = tpu.matmul %28, %29, %cst_15 {dimension_numbers = #tpu.dot_dimension_numbers<[1], [0], [0], [1], [0, 0, 1, 1], [], []>} : vector<1x32xf32>, vector<32x32xf32>, vector<1x32xf32> -> vector<1x32xf32>
    %c0_16 = arith.constant 0 : index
    %c0_17 = arith.constant 0 : index
    %31 = vector.load %arg5[%c0_16, %c0_17] : memref<1x32xf32, #tpu.memory_space<vmem>>, vector<1x32xf32>
    %32 = arith.addf %30, %31 : vector<1x32xf32>
    %cst_18 = arith.constant 0.353553385 : f32
    %33 = vector.broadcast %cst_18 : f32 to vector<1x32xf32>
    %34 = arith.mulf %32, %33 : vector<1x32xf32>
    %c0_19 = arith.constant 0 : index
    %c0_20 = arith.constant 0 : index
    %35 = vector.load %arg6[%c0_19, %c0_20] : memref<32x32xf32, #tpu.memory_space<vmem>>, vector<32x32xf32>
    %36 = vector.broadcast %34 : vector<1x32xf32> to vector<32x32xf32>
    %37 = arith.mulf %35, %36 : vector<32x32xf32>
    %c0_21 = arith.constant 0 : index
    %c0_22 = arith.constant 0 : index
    %38 = vector.load %arg10[%c0_21, %c0_22] : memref<32x4xf32, #tpu.memory_space<vmem>>, vector<32x4xf32>
    %cst_23 = arith.constant dense<0.000000e+00> : vector<32x4xf32>
    %39 = tpu.matmul %37, %38, %cst_23 {dimension_numbers = #tpu.dot_dimension_numbers<[1], [0], [0], [1], [0, 0, 1, 1], [], []>} : vector<32x32xf32>, vector<32x4xf32>, vector<32x4xf32> -> vector<32x4xf32>
    %c0_24 = arith.constant 0 : index
    %c0_25 = arith.constant 0 : index
    %40 = vector.load %arg7[%c0_24, %c0_25] : memref<1x32xf32, #tpu.memory_space<vmem>>, vector<1x32xf32>
    %41 = arith.mulf %40, %34 : vector<1x32xf32>
    %c0_26 = arith.constant 0 : index
    %c0_27 = arith.constant 0 : index
    %42 = vector.load %arg10[%c0_26, %c0_27] : memref<32x4xf32, #tpu.memory_space<vmem>>, vector<32x4xf32>
    %cst_28 = arith.constant dense<0.000000e+00> : vector<1x4xf32>
    %43 = tpu.matmul %41, %42, %cst_28 {dimension_numbers = #tpu.dot_dimension_numbers<[1], [0], [0], [1], [0, 0, 1, 1], [], []>} : vector<1x32xf32>, vector<32x4xf32>, vector<1x4xf32> -> vector<1x4xf32>
    %cst_29 = arith.constant dense<0.000000e+00> : vector<16x4xf32>
    %44 = tpu.matmul %23, %39, %cst_29 {dimension_numbers = #tpu.dot_dimension_numbers<[1], [0], [0], [1], [0, 0, 1, 1], [], []>} : vector<16x32xf32>, vector<32x4xf32>, vector<16x4xf32> -> vector<16x4xf32>
    %45 = vector.broadcast %43 : vector<1x4xf32> to vector<16x4xf32>
    %46 = arith.addf %44, %45 : vector<16x4xf32>
    %47 = tpu.iota {dimensions = array<i32: 0>} : vector<16x1xi32>
    %c13_i32 = arith.constant 13 : i32
    %48 = vector.broadcast %c13_i32 : i32 to vector<16x1xi32>
    %49 = arith.cmpi slt, %47, %48 : vector<16x1xi32>
    %cst_30 = arith.constant -1.000000e+30 : f32
    %50 = vector.shape_cast %49 : vector<16x1xi1> to vector<16x1xi1>
    %51 = vector.broadcast %50 : vector<16x1xi1> to vector<16x4xi1>
    %52 = vector.broadcast %cst_30 : f32 to vector<16x4xf32>
    %53 = arith.select %51, %46, %52 : vector<16x4xi1>, vector<16x4xf32>
    %cst_31 = arith.constant dense<0xFF800000> : vector<4xf32>
    %54 = vector.multi_reduction <maximumf>, %53, %cst_31 [0] : vector<16x4xf32> to vector<4xf32>
    %55 = vector.shape_cast %54 : vector<4xf32> to vector<1x4xf32>
    %56 = vector.broadcast %55 : vector<1x4xf32> to vector<16x4xf32>
    %57 = arith.subf %53, %56 : vector<16x4xf32>
    %58 = math.exp %57 : vector<16x4xf32>
    %cst_32 = arith.constant dense<0.000000e+00> : vector<4xf32>
    %59 = vector.multi_reduction <add>, %58, %cst_32 [0] : vector<16x4xf32> to vector<4xf32>
    %60 = vector.shape_cast %59 : vector<4xf32> to vector<1x4xf32>
    %61 = vector.broadcast %60 : vector<1x4xf32> to vector<16x4xf32>
    %62 = arith.divf %58, %61 : vector<16x4xf32>
    %63 = arith.truncf %23 : vector<16x32xf32> to vector<16x32xbf16>
    %c0_33 = arith.constant 0 : index
    %c0_34 = arith.constant 0 : index
    %64 = vector.load %arg8[%c0_33, %c0_34] : memref<32x32xbf16, #tpu.memory_space<vmem>>, vector<32x32xbf16>
    %cst_35 = arith.constant dense<0.000000e+00> : vector<16x32xf32>
    %65 = tpu.matmul %63, %64, %cst_35 {dimension_numbers = #tpu.dot_dimension_numbers<[1], [0], [0], [1], [0, 0, 1, 1], [], []>} : vector<16x32xbf16>, vector<32x32xbf16>, vector<16x32xf32> -> vector<16x32xf32>
    %c0_36 = arith.constant 0 : index
    %c0_37 = arith.constant 0 : index
    %66 = vector.load %arg9[%c0_36, %c0_37] : memref<1x32xf32, #tpu.memory_space<vmem>>, vector<1x32xf32>
    %67 = vector.broadcast %66 : vector<1x32xf32> to vector<16x32xf32>
    %68 = arith.addf %65, %67 : vector<16x32xf32>
    %cst_38 = arith.constant 1.000000e+00 : f32
    %69 = vector.broadcast %cst_38 : f32 to vector<1x4xf32>
    %cst_39 = arith.constant dense<0.000000e+00> : vector<1x16xf32>
    %70 = tpu.matmul %69, %62, %cst_39 {dimension_numbers = #tpu.dot_dimension_numbers<[1], [1], [0], [0], [0, 0, 1, 0], [], []>} : vector<1x4xf32>, vector<16x4xf32>, vector<1x16xf32> -> vector<1x16xf32>
    %cst_40 = arith.constant 1.000000e+00 : f32
    %71 = vector.broadcast %cst_40 : f32 to vector<1x32xf32>
    %72 = arith.mulf %68, %68 : vector<16x32xf32>
    %cst_41 = arith.constant dense<0.000000e+00> : vector<1x16xf32>
    %73 = tpu.matmul %71, %72, %cst_41 {dimension_numbers = #tpu.dot_dimension_numbers<[1], [1], [0], [0], [0, 0, 1, 0], [], []>} : vector<1x32xf32>, vector<16x32xf32>, vector<1x16xf32> -> vector<1x16xf32>
    %74 = math.sqrt %73 : vector<1x16xf32>
    %75 = arith.mulf %70, %74 : vector<1x16xf32>
    %c0_42 = arith.constant 0 : index
    %c0_43 = arith.constant 0 : index
    %c0_44 = arith.constant 0 : index
    %76 = vector.load %arg12[%c0_42, %c0_43, %c0_44] : memref<1x1x16xf32, #tpu.memory_space<vmem>>, vector<1x1x16xf32>
    %77 = vector.shape_cast %76 : vector<1x1x16xf32> to vector<1x16xf32>
    %78 = vector.shape_cast %75 : vector<1x16xf32> to vector<1x1x16xf32>
    tpu.vector_store %arg12[%c0_42, %c0_43, %c0_44], %78 {strides = array<i32>} : memref<1x1x16xf32, #tpu.memory_space<vmem>>, vector<1x1x16xf32>,
    return
  }
  func.func @transform_0(%arg0: i32) -> (i32, i32, i32) {
    %c0_i32 = arith.constant 0 : i32
    %c0_i32_0 = arith.constant 0 : i32
    %c0_i32_1 = arith.constant 0 : i32
    return %arg0, %c0_i32, %c0_i32_0 : i32, i32, i32
  }
  func.func @transform_1(%arg0: i32) -> (i32, i32) {
    %c0_i32 = arith.constant 0 : i32
    %c0_i32_0 = arith.constant 0 : i32
    %c0_i32_1 = arith.constant 0 : i32
    return %c0_i32, %c0_i32_0 : i32, i32
  }
  func.func @transform_2(%arg0: i32) -> (i32, i32) {
    %c0_i32 = arith.constant 0 : i32
    %c0_i32_0 = arith.constant 0 : i32
    %c0_i32_1 = arith.constant 0 : i32
    return %c0_i32, %c0_i32_0 : i32, i32
  }
  func.func @transform_3(%arg0: i32) -> (i32, i32) {
    %c0_i32 = arith.constant 0 : i32
    %c0_i32_0 = arith.constant 0 : i32
    %c0_i32_1 = arith.constant 0 : i32
    return %c0_i32, %c0_i32_0 : i32, i32
  }
  func.func @transform_4(%arg0: i32) -> (i32, i32) {
    %c0_i32 = arith.constant 0 : i32
    %c0_i32_0 = arith.constant 0 : i32
    %c0_i32_1 = arith.constant 0 : i32
    return %c0_i32, %c0_i32_0 : i32, i32
  }
  func.func @transform_5(%arg0: i32) -> (i32, i32) {
    %c0_i32 = arith.constant 0 : i32
    %c0_i32_0 = arith.constant 0 : i32
    %c0_i32_1 = arith.constant 0 : i32
    return %c0_i32, %c0_i32_0 : i32, i32
  }
  func.func @transform_6(%arg0: i32) -> (i32, i32) {
    %c0_i32 = arith.constant 0 : i32
    %c0_i32_0 = arith.constant 0 : i32
    %c0_i32_1 = arith.constant 0 : i32
    return %c0_i32, %c0_i32_0 : i32, i32
  }
  func.func @transform_7(%arg0: i32) -> (i32, i32) {
    %c0_i32 = arith.constant 0 : i32
    %c0_i32_0 = arith.constant 0 : i32
    %c0_i32_1 = arith.constant 0 : i32
    return %c0_i32, %c0_i32_0 : i32, i32
  }
  func.func @transform_8(%arg0: i32) -> (i32, i32) {
    %c0_i32 = arith.constant 0 : i32
    %c0_i32_0 = arith.constant 0 : i32
    %c0_i32_1 = arith.constant 0 : i32
    return %c0_i32, %c0_i32_0 : i32, i32
  }
  func.func @transform_9(%arg0: i32) -> (i32, i32) {
    %c0_i32 = arith.constant 0 : i32
    %c0_i32_0 = arith.constant 0 : i32
    %c0_i32_1 = arith.constant 0 : i32
    return %c0_i32, %c0_i32_0 : i32, i32
  }
  func.func @transform_10(%arg0: i32) -> (i32, i32, i32) {
    %c0_i32 = arith.constant 0 : i32
    %c0_i32_0 = arith.constant 0 : i32
    %c0_i32_1 = arith.constant 0 : i32
    return %arg0, %c0_i32, %c0_i32_0 : i32, i32, i32
  }
  func.func @transform_11(%arg0: i32) -> (i32, i32, i32) {
    %c0_i32 = arith.constant 0 : i32
    %c0_i32_0 = arith.constant 0 : i32
    %c0_i32_1 = arith.constant 0 : i32
    return %arg0, %c0_i32, %c0_i32_0 : i32, i32, i32
  }
}

</mosaic_0001>

<llo_original>
// kernel: tpu_custom_call.1
$region0: #{tpu_custom_call.1}
  #allocation0 [shape = 'u32[]', space=smem, size = 0x4, offset = 0x4, fixed_abs, tag = 'smem constant byte address 0x4 - core index']
  #allocation1 [shape = 'u32[72,128]{1,0:T(1,128)}', space=vmem, size = 0x9000, scoped, tag = 'internal scratch']
  %s0 = inlined_call_operand.vmem [shape: f32[2,16,32], index: 0, kind: input, shape index: {}]
  %s1 = inlined_call_operand.vmem [shape: f32[1,32], index: 1, kind: input, shape index: {}]
  %s2 = inlined_call_operand.vmem [shape: f32[1,32], index: 2, kind: input, shape index: {}]
  %s3 = inlined_call_operand.hbm [shape: f32[32,32], index: 3, kind: input, shape index: {}]
  %s4 = inlined_call_operand.vmem [shape: f32[1,32], index: 4, kind: input, shape index: {}]
  %s5 = inlined_call_operand.hbm [shape: f32[32,32], index: 5, kind: input, shape index: {}]
  %s6 = inlined_call_operand.vmem [shape: f32[1,32], index: 6, kind: input, shape index: {}]
  %s7 = inlined_call_operand.hbm [shape: bf16[32,32], index: 7, kind: input, shape index: {}]
  %s8 = inlined_call_operand.vmem [shape: f32[1,32], index: 8, kind: input, shape index: {}]
  %s9 = inlined_call_operand.vmem [shape: f32[32,4], index: 9, kind: input, shape index: {}]
  %s10 = inlined_call_operand.hbm [shape: bf16[2,16,32], index: 10, kind: output, shape index: {0}]
  %s11 = inlined_call_operand.hbm [shape: f32[2,1,16], index: 11, kind: output, shape index: {1}]
  %12 = xla_tuple %s10, %s11
  %s13 = sld [smem:[#allocation0]]
  $region93: #{tpu_custom_call.1} parent=0
    _
  %s15 = ssub.s32 1, %s13
  %s16 = scalar_select 0, %s15, %s13
  $region1: #{tpu_custom_call.1} parent=0
    #allocation2 [shape = 'u8[16384]{0}', space=vmem, size = 0x4000, scoped, tag = 'input window, operand 3, single buffered']
    #allocation3 [shape = 's32[2]{0}', space=sflag, size = 0x8, scoped, tag = 'scoped memory for tpu_custom_call.1']
    #allocation4 [shape = 's32[2]{0}', space=sflag, size = 0x8, scoped, tag = 'scoped memory for tpu_custom_call.1']
    #allocation5 [shape = 'u8[16384]{0}', space=vmem, size = 0x4000, scoped, tag = 'input window, operand 5, single buffered']
    #allocation6 [shape = 's32[1]{0}', space=sflag, size = 0x4, scoped, tag = 'scoped memory for tpu_custom_call.1']
    #allocation7 [shape = 'u8[8192]{0}', space=vmem, size = 0x2000, scoped, tag = 'input window, operand 7, single buffered']
    #allocation8 [shape = 'u8[8192]{0}', space=vmem, size = 0x2000, scoped, tag = 'output window, operand 0']
    #allocation9 [shape = 'u8[1024]{0}', space=vmem, size = 0x400, scoped, tag = 'output window, operand 1']
    #allocation10 [shape = 's32[2]{0}', space=sflag, size = 0x8, scoped, tag = 'scoped memory for tpu_custom_call.1']
    %17 = vsyncpa [#allocation3], 0
    %18 = vsyncpa [#allocation6], 0
    %19 = vsyncpa [#allocation4], 0
    %s20 = scalar_lea.sflag [#allocation4], 1
    %21 = vsyncpa %s20, 0
    %22 = vsyncpa [#allocation10], 0
    %s23 = scalar_lea.sflag [#allocation10], 1
    %24 = vsyncpa %s23, 0
    loop: start=0, step=1, limit=4
    $region2: #{tpu_custom_call.1} parent=1 // loop_pre_header
      _
    $region3: #{tpu_custom_call.1} parent=1 // loop_header
      %s26 = sphi 0, %s30
      %p27 = scmp.ge.s32.totalorder %s26, 4
      %s36 = sphi 0, %s38
      %s39 = sphi 0, %s36
      %s40 = sphi 0, %s39
      %s56 = sphi 0, %s40
      %s60 = sphi 0, %s60
      %s62 = sphi 0, %s60
      %s63 = sphi 0, %s62
      %s77 = sphi 0, %s63
      %s81 = sphi 0, %s81
      %s83 = sphi 0, %s81
      %s84 = sphi 0, %s83
      %s98 = sphi 0, %s84
      %s102 = sphi 0, %s102
      %s104 = sphi 0, %s102
      %s105 = sphi 0, %s104
      %s119 = sphi 0, %s105
      %s123 = sphi 0, %s123
      %s125 = sphi 0, %s123
      %s126 = sphi 0, %s125
      %s140 = sphi 0, %s126
      %s144 = sphi 0, %s144
      %s146 = sphi 0, %s144
      %s147 = sphi 0, %s146
      %s161 = sphi 0, %s147
      %s165 = sphi 0, %s165
      %s167 = sphi 0, %s165
      %s168 = sphi 0, %s167
      %s182 = sphi 0, %s168
      %s186 = sphi 0, %s186
      %s188 = sphi 0, %s186
      %s189 = sphi 0, %s188
      %s203 = sphi 0, %s189
      %s207 = sphi 0, %s207
      %s209 = sphi 0, %s207
      %s210 = sphi 0, %s209
      %s224 = sphi 0, %s210
      %s228 = sphi 0, %s228
      %s230 = sphi 0, %s228
      %s231 = sphi 0, %s230
      %s245 = sphi 0, %s231
      %s251 = sphi 0, %s253
      %s254 = sphi 0, %s251
      %s255 = sphi 0, %s254
      %s271 = sphi 0, %s255
      %s277 = sphi 0, %s279
      %s280 = sphi 0, %s277
      %s281 = sphi 0, %s280
      %s297 = sphi 0, %s281
    $region4: #{tpu_custom_call.1} parent=1 // loop_header_branch
      %29 = sbr.rel (%p27) target = $region8
    $region5: #{tpu_custom_call.1} parent=1 // loop_body
      %s31 = ssub.s32 %s26, 1
      %s32 = ssub.s32 %s26, 2
      %s33 = sadd.s32 %s26, 1
      %s34 = ssub.s32 %s26, %s33
      %p35 = scmp.eq.s32.totalorder %s34, 0
      %s37 = sadd.s32 %s36, 1
      %s38 = scalar_select %p35, %s36, %s37
      %p41 = pneg %p35
      %p42 = scmp.eq.s32.totalorder %s26, 1
      %p43 = por %p41, %p42
      %p44 = scmp.ne.s32.totalorder %s36, %s39
      %p45 = scmp.eq.s32.totalorder %s26, 0
      %p46 = por %p44, %p45
      %p47 = scmp.ne.s32.totalorder %s36, %s39
      %p48 = scmp.eq.s32.totalorder %s31, 1
      %p49 = por %p47, %p48
      %p50 = scmp.ne.s32.totalorder %s39, %s40
      %p51 = scmp.eq.s32.totalorder %s31, 0
      %p52 = por %p50, %p51
      %p53 = scmp.ne.s32.totalorder %s39, %s40
      %p54 = scmp.eq.s32.totalorder %s32, 1
      %p55 = por %p53, %p54
      %p57 = scmp.ne.s32.totalorder %s40, %s56
      %p58 = scmp.eq.s32.totalorder %s32, 0
      %p59 = por %p57, %p58
      %s61 = sadd.s32 %s60, 1
      %p64 = scmp.eq.s32.totalorder %s26, 1
      %p65 = scmp.ne.s32.totalorder %s60, %s62
      %p66 = scmp.eq.s32.totalorder %s26, 0
      %p67 = por %p65, %p66
      %p68 = scmp.ne.s32.totalorder %s60, %s62
      %p69 = scmp.eq.s32.totalorder %s31, 1
      %p70 = por %p68, %p69
      %p71 = scmp.ne.s32.totalorder %s62, %s63
      %p72 = scmp.eq.s32.totalorder %s31, 0
      %p73 = por %p71, %p72
      %p74 = scmp.ne.s32.totalorder %s62, %s63
      %p75 = scmp.eq.s32.totalorder %s32, 1
      %p76 = por %p74, %p75
      %p78 = scmp.ne.s32.totalorder %s63, %s77
      %p79 = scmp.eq.s32.totalorder %s32, 0
      %p80 = por %p78, %p79
      %s82 = sadd.s32 %s81, 1
      %p85 = scmp.eq.s32.totalorder %s26, 1
      %p86 = scmp.ne.s32.totalorder %s81, %s83
      %p87 = scmp.eq.s32.totalorder %s26, 0
      %p88 = por %p86, %p87
      %p89 = scmp.ne.s32.totalorder %s81, %s83
      %p90 = scmp.eq.s32.totalorder %s31, 1
      %p91 = por %p89, %p90
      %p92 = scmp.ne.s32.totalorder %s83, %s84
      %p93 = scmp.eq.s32.totalorder %s31, 0
      %p94 = por %p92, %p93
      %p95 = scmp.ne.s32.totalorder %s83, %s84
      %p96 = scmp.eq.s32.totalorder %s32, 1
      %p97 = por %p95, %p96
      %p99 = scmp.ne.s32.totalorder %s84, %s98
      %p100 = scmp.eq.s32.totalorder %s32, 0
      %p101 = por %p99, %p100
      %s103 = sadd.s32 %s102, 1
      %p106 = scmp.eq.s32.totalorder %s26, 1
      %p107 = scmp.ne.s32.totalorder %s102, %s104
      %p108 = scmp.eq.s32.totalorder %s26, 0
      %p109 = por %p107, %p108
      %p110 = scmp.ne.s32.totalorder %s102, %s104
      %p111 = scmp.eq.s32.totalorder %s31, 1
      %p112 = por %p110, %p111
      %p113 = scmp.ne.s32.totalorder %s104, %s105
      %p114 = scmp.eq.s32.totalorder %s31, 0
      %p115 = por %p113, %p114
      %p116 = scmp.ne.s32.totalorder %s104, %s105
      %p117 = scmp.eq.s32.totalorder %s32, 1
      %p118 = por %p116, %p117
      %p120 = scmp.ne.s32.totalorder %s105, %s119
      %p121 = scmp.eq.s32.totalorder %s32, 0
      %p122 = por %p120, %p121
      %s124 = sadd.s32 %s123, 1
      %p127 = scmp.eq.s32.totalorder %s26, 1
      %p128 = scmp.ne.s32.totalorder %s123, %s125
      %p129 = scmp.eq.s32.totalorder %s26, 0
      %p130 = por %p128, %p129
      %p131 = scmp.ne.s32.totalorder %s123, %s125
      %p132 = scmp.eq.s32.totalorder %s31, 1
      %p133 = por %p131, %p132
      %p134 = scmp.ne.s32.totalorder %s125, %s126
      %p135 = scmp.eq.s32.totalorder %s31, 0
      %p136 = por %p134, %p135
      %p137 = scmp.ne.s32.totalorder %s125, %s126
      %p138 = scmp.eq.s32.totalorder %s32, 1
      %p139 = por %p137, %p138
      %p141 = scmp.ne.s32.totalorder %s126, %s140
      %p142 = scmp.eq.s32.totalorder %s32, 0
      %p143 = por %p141, %p142
      %s145 = sadd.s32 %s144, 1
      %p148 = scmp.eq.s32.totalorder %s26, 1
      %p149 = scmp.ne.s32.totalorder %s144, %s146
      %p150 = scmp.eq.s32.totalorder %s26, 0
      %p151 = por %p149, %p150
      %p152 = scmp.ne.s32.totalorder %s144, %s146
      %p153 = scmp.eq.s32.totalorder %s31, 1
      %p154 = por %p152, %p153
      %p155 = scmp.ne.s32.totalorder %s146, %s147
      %p156 = scmp.eq.s32.totalorder %s31, 0
      %p157 = por %p155, %p156
      %p158 = scmp.ne.s32.totalorder %s146, %s147
      %p159 = scmp.eq.s32.totalorder %s32, 1
      %p160 = por %p158, %p159
      %p162 = scmp.ne.s32.totalorder %s147, %s161
      %p163 = scmp.eq.s32.totalorder %s32, 0
      %p164 = por %p162, %p163
      %s166 = sadd.s32 %s165, 1
      %p169 = scmp.eq.s32.totalorder %s26, 1
      %p170 = scmp.ne.s32.totalorder %s165, %s167
      %p171 = scmp.eq.s32.totalorder %s26, 0
      %p172 = por %p170, %p171
      %p173 = scmp.ne.s32.totalorder %s165, %s167
      %p174 = scmp.eq.s32.totalorder %s31, 1
      %p175 = por %p173, %p174
      %p176 = scmp.ne.s32.totalorder %s167, %s168
      %p177 = scmp.eq.s32.totalorder %s31, 0
      %p178 = por %p176, %p177
      %p179 = scmp.ne.s32.totalorder %s167, %s168
      %p180 = scmp.eq.s32.totalorder %s32, 1
      %p181 = por %p179, %p180
      %p183 = scmp.ne.s32.totalorder %s168, %s182
      %p184 = scmp.eq.s32.totalorder %s32, 0
      %p185 = por %p183, %p184
      %s187 = sadd.s32 %s186, 1
      %p190 = scmp.eq.s32.totalorder %s26, 1
      %p191 = scmp.ne.s32.totalorder %s186, %s188
      %p192 = scmp.eq.s32.totalorder %s26, 0
      %p193 = por %p191, %p192
      %p194 = scmp.ne.s32.totalorder %s186, %s188
      %p195 = scmp.eq.s32.totalorder %s31, 1
      %p196 = por %p194, %p195
      %p197 = scmp.ne.s32.totalorder %s188, %s189
      %p198 = scmp.eq.s32.totalorder %s31, 0
      %p199 = por %p197, %p198
      %p200 = scmp.ne.s32.totalorder %s188, %s189
      %p201 = scmp.eq.s32.totalorder %s32, 1
      %p202 = por %p200, %p201
      %p204 = scmp.ne.s32.totalorder %s189, %s203
      %p205 = scmp.eq.s32.totalorder %s32, 0
      %p206 = por %p204, %p205
      %s208 = sadd.s32 %s207, 1
      %p211 = scmp.eq.s32.totalorder %s26, 1
      %p212 = scmp.ne.s32.totalorder %s207, %s209
      %p213 = scmp.eq.s32.totalorder %s26, 0
      %p214 = por %p212, %p213
      %p215 = scmp.ne.s32.totalorder %s207, %s209
      %p216 = scmp.eq.s32.totalorder %s31, 1
      %p217 = por %p215, %p216
      %p218 = scmp.ne.s32.totalorder %s209, %s210
      %p219 = scmp.eq.s32.totalorder %s31, 0
      %p220 = por %p218, %p219
      %p221 = scmp.ne.s32.totalorder %s209, %s210
      %p222 = scmp.eq.s32.totalorder %s32, 1
      %p223 = por %p221, %p222
      %p225 = scmp.ne.s32.totalorder %s210, %s224
      %p226 = scmp.eq.s32.totalorder %s32, 0
      %p227 = por %p225, %p226
      %s229 = sadd.s32 %s228, 1
      %p232 = scmp.eq.s32.totalorder %s26, 1
      %p233 = scmp.ne.s32.totalorder %s228, %s230
      %p234 = scmp.eq.s32.totalorder %s26, 0
      %p235 = por %p233, %p234
      %p236 = scmp.ne.s32.totalorder %s228, %s230
      %p237 = scmp.eq.s32.totalorder %s31, 1
      %p238 = por %p236, %p237
      %p239 = scmp.ne.s32.totalorder %s230, %s231
      %p240 = scmp.eq.s32.totalorder %s31, 0
      %p241 = por %p239, %p240
      %p242 = scmp.ne.s32.totalorder %s230, %s231
      %p243 = scmp.eq.s32.totalorder %s32, 1
      %p244 = por %p242, %p243
      %p246 = scmp.ne.s32.totalorder %s231, %s245
      %p247 = scmp.eq.s32.totalorder %s32, 0
      %p248 = por %p246, %p247
      %s249 = ssub.s32 %s26, %s33
      %p250 = scmp.eq.s32.totalorder %s249, 0
      %s252 = sadd.s32 %s251, 1
      %s253 = scalar_select %p250, %s251, %s252
      %p256 = pneg %p250
      %p257 = scmp.eq.s32.totalorder %s26, 1
      %p258 = por %p256, %p257
      %p259 = scmp.ne.s32.totalorder %s251, %s254
      %p260 = scmp.eq.s32.totalorder %s26, 0
      %p261 = por %p259, %p260
      %p262 = scmp.ne.s32.totalorder %s251, %s254
      %p263 = scmp.eq.s32.totalorder %s31, 1
      %p264 = por %p262, %p263
      %p265 = scmp.ne.s32.totalorder %s254, %s255
      %p266 = scmp.eq.s32.totalorder %s31, 0
      %p267 = por %p265, %p266
      %p268 = scmp.ne.s32.totalorder %s254, %s255
      %p269 = scmp.eq.s32.totalorder %s32, 1
      %p270 = por %p268, %p269
      %p272 = scmp.ne.s32.totalorder %s255, %s271
      %p273 = scmp.eq.s32.totalorder %s32, 0
      %p274 = por %p272, %p273
      %s275 = ssub.s32 %s26, %s33
      %p276 = scmp.eq.s32.totalorder %s275, 0
      %s278 = sadd.s32 %s277, 1
      %s279 = scalar_select %p276, %s277, %s278
      %p282 = pneg %p276
      %p283 = scmp.eq.s32.totalorder %s26, 1
      %p284 = por %p282, %p283
      %p285 = scmp.ne.s32.totalorder %s277, %s280
      %p286 = scmp.eq.s32.totalorder %s26, 0
      %p287 = por %p285, %p286
      %p288 = scmp.ne.s32.totalorder %s277, %s280
      %p289 = scmp.eq.s32.totalorder %s31, 1
      %p290 = por %p288, %p289
      %p291 = scmp.ne.s32.totalorder %s280, %s281
      %p292 = scmp.eq.s32.totalorder %s31, 0
      %p293 = por %p291, %p292
      %p294 = scmp.ne.s32.totalorder %s280, %s281
      %p295 = scmp.eq.s32.totalorder %s32, 1
      %p296 = por %p294, %p295
      %p298 = scmp.ne.s32.totalorder %s281, %s297
      %p299 = scmp.eq.s32.totalorder %s32, 0
      %p300 = por %p298, %p299
      %p301 = scmp.le.s32.totalorder 1, %s26
      %p302 = scmp.lt.s32.totalorder %s26, 3
      %p303 = pnand %p301, %p302
      %p304 = pneg %p303
      // Predicated region
      $region9: #{tpu_custom_call.1} parent=5 // pred_check
        _
      $region10: #{tpu_custom_call.1} parent=5 // pred_check_branch
        %306 = sbr.rel (%p303) target = $region12
      $region11: #{tpu_custom_call.1} parent=5 // pred_region
        %s307 = ssub.s32 %s26, 1
        // Predicated region
        $region13: #{tpu_custom_call.1} parent=11 // pred_check
          %p308 = pneg %p73
        $region14: #{tpu_custom_call.1} parent=11 // pred_check_branch
          %310 = sbr.rel (%p308) target = $region16
        $region15: #{tpu_custom_call.1} parent=11 // pred_region
          _
        $region16: #{tpu_custom_call.1} parent=11 // pred_fallthru
          _
        // Predicated region
        $region17: #{tpu_custom_call.1} parent=11 // pred_check
          %p311 = pneg %p94
        $region18: #{tpu_custom_call.1} parent=11 // pred_check_branch
          %313 = sbr.rel (%p311) target = $region20
        $region19: #{tpu_custom_call.1} parent=11 // pred_region
          _
        $region20: #{tpu_custom_call.1} parent=11 // pred_fallthru
          _
        // Predicated region
        $region21: #{tpu_custom_call.1} parent=11 // pred_check
          %p314 = pneg %p115
        $region22: #{tpu_custom_call.1} parent=11 // pred_check_branch
          %316 = sbr.rel (%p314) target = $region24
        $region23: #{tpu_custom_call.1} parent=11 // pred_region
          %318 = vsyncadd [#allocation3], 0
          %s319 = sshll.u32 %s3, 4
          %s320 = int_to_ptr.hbm [resolvable:$true] %s319
          %s321 = sshll.u32 [#allocation2], 4
          %s322 = int_to_ptr.vmem [resolvable:$true] %s321
          %327 = dma.hbm_to_vmem [thread:$0]  %s320, 512, %s322, [#allocation3], 128, 128, 8
        $region24: #{tpu_custom_call.1} parent=11 // pred_fallthru
          _
        // Predicated region
        $region25: #{tpu_custom_call.1} parent=11 // pred_check
          %p328 = pneg %p136
        $region26: #{tpu_custom_call.1} parent=11 // pred_check_branch
          %330 = sbr.rel (%p328) target = $region28
        $region27: #{tpu_custom_call.1} parent=11 // pred_region
          _
        $region28: #{tpu_custom_call.1} parent=11 // pred_fallthru
          _
        // Predicated region
        $region29: #{tpu_custom_call.1} parent=11 // pred_check
          %p331 = pneg %p157
        $region30: #{tpu_custom_call.1} parent=11 // pred_check_branch
          %333 = sbr.rel (%p331) target = $region32
        $region31: #{tpu_custom_call.1} parent=11 // pred_region
          %335 = vsyncadd [#allocation6], 0
          %s336 = sshll.u32 %s5, 4
          %s337 = int_to_ptr.hbm [resolvable:$true] %s336
          %s338 = sshll.u32 [#allocation5], 4
          %s339 = int_to_ptr.vmem [resolvable:$true] %s338
          %344 = dma.hbm_to_vmem [thread:$0]  %s337, 512, %s339, [#allocation6], 128, 128, 8
        $region32: #{tpu_custom_call.1} parent=11 // pred_fallthru
          _
        // Predicated region
        $region33: #{tpu_custom_call.1} parent=11 // pred_check
          %p345 = pneg %p178
        $region34: #{tpu_custom_call.1} parent=11 // pred_check_branch
          %347 = sbr.rel (%p345) target = $region36
        $region35: #{tpu_custom_call.1} parent=11 // pred_region
          _
        $region36: #{tpu_custom_call.1} parent=11 // pred_fallthru
          _
        // Predicated region
        $region37: #{tpu_custom_call.1} parent=11 // pred_check
          %p348 = pneg %p199
        $region38: #{tpu_custom_call.1} parent=11 // pred_check_branch
          %350 = sbr.rel (%p348) target = $region40
        $region39: #{tpu_custom_call.1} parent=11 // pred_region
          %352 = vsyncadd [#allocation6], 0
          %s353 = sshll.u32 %s7, 4
          %s354 = int_to_ptr.hbm [resolvable:$true] %s353
          %s355 = sshll.u32 [#allocation7], 4
          %s356 = int_to_ptr.vmem [resolvable:$true] %s355
          %361 = dma.hbm_to_vmem [thread:$0]  %s354, 256, %s356, [#allocation6], 64, 64, 4
        $region40: #{tpu_custom_call.1} parent=11 // pred_fallthru
          _
        // Predicated region
        $region41: #{tpu_custom_call.1} parent=11 // pred_check
          %p362 = pneg %p220
        $region42: #{tpu_custom_call.1} parent=11 // pred_check_branch
          %364 = sbr.rel (%p362) target = $region44
        $region43: #{tpu_custom_call.1} parent=11 // pred_region
          _
        $region44: #{tpu_custom_call.1} parent=11 // pred_fallthru
          _
        // Predicated region
        $region45: #{tpu_custom_call.1} parent=11 // pred_check
          %p365 = pneg %p241
        $region46: #{tpu_custom_call.1} parent=11 // pred_check_branch
          %367 = sbr.rel (%p365) target = $region48
        $region47: #{tpu_custom_call.1} parent=11 // pred_region
          _
        $region48: #{tpu_custom_call.1} parent=11 // pred_fallthru
          _
      $region12: #{tpu_custom_call.1} parent=5 // pred_fallthru
        _
      %p368 = scmp.lt.s32.totalorder %s26, 2
      // Predicated region
      $region49: #{tpu_custom_call.1} parent=5 // pred_check
        %p369 = pneg %p368
      $region50: #{tpu_custom_call.1} parent=5 // pred_check_branch
        %371 = sbr.rel (%p369) target = $region52
      $region51: #{tpu_custom_call.1} parent=5 // pred_region
        // Predicated region
        $region53: #{tpu_custom_call.1} parent=51 // pred_check
          %p372 = pneg %p46
        $region54: #{tpu_custom_call.1} parent=51 // pred_check_branch
          %374 = sbr.rel (%p372) target = $region56
        $region55: #{tpu_custom_call.1} parent=51 // pred_region
          %p375 = scmp.lt.s32.totalorder %s26, 1
          %s376 = scalar_select %p375, %s26, 1
          %s377 = smul.addr %s376, 2
          %s378 = smul.addr %s377, 8
          %s379 = scalar_lea.vmem %s0, %s378
        $region56: #{tpu_custom_call.1} parent=51 // pred_fallthru
          _
      $region52: #{tpu_custom_call.1} parent=5 // pred_fallthru
        _
      %p380 = scmp.le.s32.totalorder 1, %s26
      %p381 = scmp.lt.s32.totalorder %s26, 3
      %p382 = pnand %p380, %p381
      %p383 = pneg %p382
      // Predicated region
      $region57: #{tpu_custom_call.1} parent=5 // pred_check
        _
      $region58: #{tpu_custom_call.1} parent=5 // pred_check_branch
        %385 = sbr.rel (%p382) target = $region60
      $region59: #{tpu_custom_call.1} parent=5 // pred_region
        %s386 = ssub.s32 %s26, 1
        // Predicated region
        $region61: #{tpu_custom_call.1} parent=59 // pred_check
          %p387 = pneg %p115
        $region62: #{tpu_custom_call.1} parent=59 // pred_check_branch
          %389 = sbr.rel (%p387) target = $region64
        $region63: #{tpu_custom_call.1} parent=59 // pred_region
          %391 = dma.done [#allocation3], 512
        $region64: #{tpu_custom_call.1} parent=59 // pred_fallthru
          _
        // Predicated region
        $region65: #{tpu_custom_call.1} parent=59 // pred_check
          %p392 = pneg %p157
        $region66: #{tpu_custom_call.1} parent=59 // pred_check_branch
          %394 = sbr.rel (%p392) target = $region68
        $region67: #{tpu_custom_call.1} parent=59 // pred_region
          %396 = dma.done [#allocation6], 512
        $region68: #{tpu_custom_call.1} parent=59 // pred_fallthru
          _
        // Predicated region
        $region69: #{tpu_custom_call.1} parent=59 // pred_check
          %p397 = pneg %p199
        $region70: #{tpu_custom_call.1} parent=59 // pred_check_branch
          %399 = sbr.rel (%p397) target = $region72
        $region71: #{tpu_custom_call.1} parent=59 // pred_region
          %401 = dma.done [#allocation6], 256
        $region72: #{tpu_custom_call.1} parent=59 // pred_fallthru
          _
        %p402 = scmp.lt.s32.totalorder %s31, 1
        %s403 = scalar_select %p402, %s31, 1
        %s404 = smul.addr %s403, 2
        %s405 = smul.addr %s404, 8
        %s406 = scalar_lea.vmem %s0, %s405
        %p407 = pneg %p52
        %p408 = pneg %p49
        %p409 = pneg %p73
        %p410 = pneg %p70
        %p411 = pneg %p94
        %p412 = pneg %p91
        %p413 = pneg %p115
        %p414 = pneg %p112
        %p415 = pneg %p136
        %p416 = pneg %p133
        %p417 = pneg %p157
        %p418 = pneg %p154
        %p419 = pneg %p178
        %p420 = pneg %p175
        %p421 = pneg %p199
        %p422 = pneg %p196
        %p423 = pneg %p220
        %p424 = pneg %p217
        %p425 = pneg %p241
        %p426 = pneg %p238
        %p427 = pneg %p267
        %p428 = pneg %p264
        %s429 = sand.u32 %s254, 1
        %s430 = scalar_lea.sflag [#allocation4], %s429
        %s431 = sand.u32 %s254, 1
        %s432 = smul.addr %s431, 8
        %s433 = scalar_lea.vmem [#allocation8], %s432
        %p434 = pneg %p293
        %p435 = pneg %p290
        %s436 = sand.u32 %s280, 1
        %s437 = scalar_lea.sflag [#allocation10], %s436
        %s438 = sand.u32 %s280, 1
        %s439 = scalar_lea.vmem [#allocation9], %s438
        %p440 = scmp.lt.s32.totalorder %s31, 1
        %s441 = scalar_select %p440, %s31, 1
        %s442 = smul.addr %s441, 2
        %s443 = smul.addr %s442, 8
        %s444 = scalar_lea.vmem %s0, %s443
        %v446 = vld [vmem:[%s444] sm:$0xff]
        %v447 = vld [vmem:[%s444 + $0x8] sm:$0xff]
        %vm448 = vcmask 261120
        %v449 = vsel %vm448, %v446, 0.0
        %450 = vadd.xlane.f32.xlu0 %v449
        %v451 = vpop.xlane.xlu0 %450
        %v452 = vsel %vm448, %v447, 0.0
        %453 = vadd.xlane.f32.xlu0 %v452
        %v454 = vpop.xlane.xlu0 %453
        %v455 = vrcp.pop 32.0
        %v456 = vmul.f32 32.0, %v455
        %v457 = vsub.f32 1.0, %v456
        %v458 = vmul.f32 %v455, %v457
        %v459 = vadd.f32 %v455, %v458
        %vm460 = vweird.f32 %v455
        %v461 = vsel %vm460, %v455, %v459
        %v462 = vmul.f32 %v451, %v461
        %v463 = vmul.f32 %v454, %v461
        %v464 = vsub.f32 %v446, %v462
        %v465 = vsub.f32 %v447, %v463
        %v466 = vmul.f32 %v464, %v464
        %v467 = vmul.f32 %v465, %v465
        %v468 = vsel %vm448, %v466, 0.0
        %469 = vadd.xlane.f32.xlu0 %v468
        %v470 = vpop.xlane.xlu0 %469
        %v471 = vsel %vm448, %v467, 0.0
        %472 = vadd.xlane.f32.xlu0 %v471
        %v473 = vpop.xlane.xlu0 %472
        %v474 = vmul.f32 %v470, %v461
        %v475 = vmul.f32 %v473, %v461
        %v476 = vadd.f32 %v474, 1e-06
        %v477 = vadd.f32 %v475, 1e-06
        %v478 = vrsqrt.pop %v476
        %v479 = vmul.f32 %v478, %v476
        %v480 = vmul.f32 %v479, %v478
        %v481 = vmul.f32 0.5, %v480
        %v482 = vsub.f32 1.5, %v481
        %v483 = vmul.f32 %v478, %v482
        %vm484 = vweird.f32 %v476
        %vm485 = vweird.f32 %v478
        %vm486 = vmor %vm484, %vm485
        %v487 = vsel %vm486, %v478, %v483
        %v488 = vrsqrt.pop %v477
        %v489 = vmul.f32 %v488, %v477
        %v490 = vmul.f32 %v489, %v488
        %v491 = vmul.f32 0.5, %v490
        %v492 = vsub.f32 1.5, %v491
        %v493 = vmul.f32 %v488, %v492
        %vm494 = vweird.f32 %v477
        %vm495 = vweird.f32 %v488
        %vm496 = vmor %vm494, %vm495
        %v497 = vsel %vm496, %v488, %v493
        %v498 = vmul.f32 %v464, %v487
        %v499 = vmul.f32 %v465, %v497
        %v500 = vld [vmem:[%s1] sm:$0x1]
        %v502 = vperm.slane %v500, 0
        %v504 = vmul.f32 %v498, %v502
        %v505 = vmul.f32 %v499, %v502
        %v506 = vld [vmem:[%s2] sm:$0x1]
        %v508 = vperm.slane %v506, 0
        %v510 = vadd.f32 %v504, %v508
        %v511 = vadd.f32 %v505, %v508
        %v512 = vpack.c.bf16 %v510, %v510
        %v513 = vpack.c.bf16 %v511, %v511
        %vm514 = vcmask 257024
        %515 = vst.msk [vmem:[%s433] sm:$0xf] %vm514, %v512
        %516 = vst.msk [vmem:[%s433 + $0x4] sm:$0xf] %vm514, %v513
        %v517 = vld [vmem:[#allocation2] sm:$0xff]
        %v518 = vld [vmem:[#allocation2 + $0x8] sm:$0xff]
        %v519 = vld [vmem:[#allocation2 + $0x10] sm:$0xff]
        %v520 = vld [vmem:[#allocation2 + $0x18] sm:$0xff]
        %v521 = vld [vmem:[%s4] sm:$0x1]
        %v523 = vsel %vm448, %v510, 0
        %525 = vmatpush.msra.mxu0 0.0
        %526 = vmatpush.msra.mxu0 0.0
        %527 = vmatpush.msra.mxu0 0.0
        %528 = vmatpush.msra.mxu0 0.0
        %529 = vmatpush.msra.mxu0 0.0
        %530 = vmatpush.msra.mxu0 0.0
        %531 = vmatpush.msra.mxu0 0.0
        %532 = vmatpush.msra.mxu0 0.0
        %533 = vmatpush.msra.mxu0 0.0
        %534 = vmatpush.msra.mxu0 0.0
        %535 = vmatpush.msra.mxu0 0.0
        %536 = vmatpush.msra.mxu0 0.0
        %537 = vmatpush.msra.mxu0 %v520
        %538 = vmatpush.msra.mxu0 %v519
        %539 = vmatpush.msra.mxu0 %v518
        %540 = vmatpush.msra.mxu0 %v517
        %541 = vmatmul.f32.gmra.mxu0 %v523
        %v542 = vpop.f32.mrf.mxu0
        %v543 = vadd.f32 %v521, %v542
        %544 = vdwg.mxu0
        %v545 = vmul.f32 %v543, 0.35355338
        %v546 = vld [vmem:[#allocation5] sm:$0xff]
        %v547 = vld [vmem:[#allocation5 + $0x8] sm:$0xff]
        %v548 = vld [vmem:[#allocation5 + $0x10] sm:$0xff]
        %v549 = vld [vmem:[#allocation5 + $0x18] sm:$0xff]
        %v550 = vperm.slane %v545, 0
        %v551 = vmul.f32 %v546, %v550
        %v552 = vmul.f32 %v547, %v550
        %v553 = vmul.f32 %v548, %v550
        %v554 = vmul.f32 %v549, %v550
        %v555 = vld [vmem:[%s9] sm:$0xff]
        %v556 = vld [vmem:[%s9 + $0x8] sm:$0xff]
        %v557 = vld [vmem:[%s9 + $0x10] sm:$0xff]
        %v558 = vld [vmem:[%s9 + $0x18] sm:$0xff]
        %v560 = vsel %vm448, %v551, 0
        %v563 = vsel %vm448, %v552, 0
        %v566 = vsel %vm448, %v553, 0
        %v569 = vsel %vm448, %v554, 0
        %571 = vmatpush.msra.mxu0 0.0
        %572 = vmatpush.msra.mxu0 0.0
        %573 = vmatpush.msra.mxu0 0.0
        %574 = vmatpush.msra.mxu0 0.0
        %575 = vmatpush.msra.mxu0 0.0
        %576 = vmatpush.msra.mxu0 0.0
        %577 = vmatpush.msra.mxu0 0.0
        %578 = vmatpush.msra.mxu0 0.0
        %579 = vmatpush.msra.mxu0 0.0
        %580 = vmatpush.msra.mxu0 0.0
        %581 = vmatpush.msra.mxu0 0.0
        %582 = vmatpush.msra.mxu0 0.0
        %583 = vmatpush.msra.mxu0 %v558
        %584 = vmatpush.msra.mxu0 %v557
        %585 = vmatpush.msra.mxu0 %v556
        %586 = vmatpush.msra.mxu0 %v555
        %587 = vmatmul.f32.gmra.mxu0 %v560
        %v588 = vpop.f32.mrf.mxu0
        %v589 = vadd.f32 0.0, %v588
        %590 = vmatmul.f32.gmra.mxu0 %v563
        %v591 = vpop.f32.mrf.mxu0
        %v592 = vadd.f32 0.0, %v591
        %593 = vmatmul.f32.gmra.mxu0 %v566
        %v594 = vpop.f32.mrf.mxu0
        %v595 = vadd.f32 0.0, %v594
        %596 = vmatmul.f32.gmra.mxu0 %v569
        %v597 = vpop.f32.mrf.mxu0
        %v598 = vadd.f32 0.0, %v597
        %599 = vdwg.mxu0
        %v600 = vld [vmem:[%s6] sm:$0x1]
        %v601 = vmul.f32 %v600, %v545
        %v603 = vsel %vm448, %v601, 0
        %605 = vmatpush.msra.mxu0 0.0
        %606 = vmatpush.msra.mxu0 0.0
        %607 = vmatpush.msra.mxu0 0.0
        %608 = vmatpush.msra.mxu0 0.0
        %609 = vmatpush.msra.mxu0 0.0
        %610 = vmatpush.msra.mxu0 0.0
        %611 = vmatpush.msra.mxu0 0.0
        %612 = vmatpush.msra.mxu0 0.0
        %613 = vmatpush.msra.mxu0 0.0
        %614 = vmatpush.msra.mxu0 0.0
        %615 = vmatpush.msra.mxu0 0.0
        %616 = vmatpush.msra.mxu0 0.0
        %617 = vmatpush.msra.mxu0 %v558
        %618 = vmatpush.msra.mxu0 %v557
        %619 = vmatpush.msra.mxu0 %v556
        %620 = vmatpush.msra.mxu0 %v555
        %621 = vmatmul.f32.gmra.mxu0 %v603
        %v622 = vpop.f32.mrf.mxu0
        %v623 = vadd.f32 0.0, %v622
        %624 = vdwg.mxu0
        %v625 = vperm.slane %v623, 0
        %v627 = vsel %vm448, %v511, 0
        %629 = vmatpush.msra.mxu0 0.0
        %630 = vmatpush.msra.mxu0 0.0
        %631 = vmatpush.msra.mxu0 0.0
        %632 = vmatpush.msra.mxu0 0.0
        %633 = vmatpush.msra.mxu0 0.0
        %634 = vmatpush.msra.mxu0 0.0
        %635 = vmatpush.msra.mxu0 0.0
        %636 = vmatpush.msra.mxu0 0.0
        %637 = vmatpush.msra.mxu0 0.0
        %638 = vmatpush.msra.mxu0 0.0
        %639 = vmatpush.msra.mxu0 0.0
        %640 = vmatpush.msra.mxu0 0.0
        %641 = vmatpush.msra.mxu0 %v598
        %642 = vmatpush.msra.mxu0 %v595
        %643 = vmatpush.msra.mxu0 %v592
        %644 = vmatpush.msra.mxu0 %v589
        %645 = vmatmul.f32.gmra.mxu0 %v523
        %v646 = vpop.f32.mrf.mxu0
        %v647 = vadd.f32 %v625, %v646
        %648 = vmatmul.f32.gmra.mxu0 %v627
        %v649 = vpop.f32.mrf.mxu0
        %v650 = vadd.f32 %v625, %v649
        %651 = vdwg.mxu0
        %v652 = vlaneseq
        %v653 = vshrl.u32 %v652, 7
        %v654 = vadd.s32 %v653, 8
        %vm655 = vcmp.lt.s32.totalorder %v653, 13
        %vm656 = vcmp.lt.s32.totalorder %v654, 13
        %v657 = vsel %vm655, 1, 0
        %v658 = vsel %vm656, 1, 0
        %vm659 = vcmp.eq.s32.totalorder %v657, 1
        %vm660 = vcmp.eq.s32.totalorder %v658, 1
        %v661 = vsel %vm659, %v647, -1e+30
        %v662 = vsel %vm660, %v650, -1e+30
        %vm663 = vcmask 31744
        %v664 = vsel %vm663, %v661, -inf
        %v665 = vsel %vm663, %v662, -inf
        %v666 = vmax.f32 %v664, %v665
        %v667 = vrot.slane %v666, 4
        %v668 = vmax.f32 %v666, %v667
        %v669 = vrot.slane %v668, 2
        %v670 = vmax.f32 %v668, %v669
        %v671 = vrot.slane %v670, 1
        %v672 = vmax.f32 %v670, %v671
        %v673 = vsub.f32 %v661, %v672
        %v674 = vsub.f32 %v662, %v672
        %v675 = vmul.f32 %v673, 1.442695
        %v676 = vpow.pop %v675
        %v677 = vmul.f32 %v674, 1.442695
        %v678 = vpow.pop %v677
        %v679 = vsel %vm663, %v676, 0.0
        %v680 = vsel %vm663, %v678, 0.0
        %v681 = vadd.f32 %v679, %v680
        %v682 = vrot.slane %v681, 4
        %v683 = vadd.f32 %v681, %v682
        %v684 = vrot.slane %v683, 2
        %v685 = vadd.f32 %v683, %v684
        %v686 = vrot.slane %v685, 1
        %v687 = vadd.f32 %v685, %v686
        %v688 = vrcp.pop %v687
        %v689 = vmul.f32 %v687, %v688
        %v690 = vsub.f32 1.0, %v689
        %v691 = vmul.f32 %v688, %v690
        %v692 = vadd.f32 %v688, %v691
        %vm693 = vweird.f32 %v687
        %vm694 = vweird.f32 %v688
        %vm695 = vmor %vm693, %vm694
        %v696 = vsel %vm695, %v688, %v692
        %v697 = vand.u32 2147483647, %v687
        %vm698 = vcmp.eq.f32.partialorder %v697, 8.507059e+37
        %v699 = vand.u32 %v687, 2147483648
        %v700 = vor.u32 1.1754944e-38, %v699
        %v701 = vsel %vm698, %v700, %v696
        %v702 = vmul.f32 %v676, %v701
        %v703 = vmul.f32 %v678, %v701
        %v704 = vld [vmem:[#allocation7] sm:$0xf]
        %v705 = vld [vmem:[#allocation7 + $0x4] sm:$0xf]
        %v706 = vld [vmem:[#allocation7 + $0x8] sm:$0xf]
        %v707 = vld [vmem:[#allocation7 + $0xc] sm:$0xf]
        %v708 = vld [vmem:[%s8] sm:$0x1]
        %v710 = vperm.slane %v708, 0
        %v714 = vunpack.c.l.b16 %v512
        %v715 = vunpack.c.l.b16 %v513
        %v716 = vpack.c.b16 %v715, %v714
        %v721 = vunpack.c.l.b16 %v704
        %v722 = vunpack.c.l.b16 %v705
        %v723 = vunpack.c.l.b16 %v706
        %v724 = vunpack.c.l.b16 %v707
        %v725 = vpack.c.b16 %v722, %v721
        %v726 = vpack.c.b16 %v724, %v723
        %v730 = vsel %vm448, %v716, 0
        %732 = vmatpush.bf16.msra.mxu0 0
        %733 = vmatpush.bf16.msra.mxu0 0
        %734 = vmatpush.bf16.msra.mxu0 0
        %735 = vmatpush.bf16.msra.mxu0 0
        %736 = vmatpush.bf16.msra.mxu0 0
        %737 = vmatpush.bf16.msra.mxu0 0
        %738 = vmatpush.bf16.msra.mxu0 %v726
        %739 = vmatpush.bf16.msra.mxu0 %v725
        %740 = vmatmul.bf16.gmra.mxu0 %v730
        %v741 = vpop.f32.mrf.mxu0
        %v742 = vadd.f32 %v710, %v741
        %v743 = vpop.f32.mrf.mxu0
        %v744 = vadd.f32 %v710, %v743
        %745 = vdwg.mxu0
        %v747 = vsel %vm663, 1.0, 0
        %v750 = vsel %vm663, %v702, 0
        %v753 = vsel %vm663, %v703, 0
        %755 = vmatpush.xpose.msra.mxu0 0.0
        %756 = vmatpush.xpose.msra.mxu0 0.0
        %757 = vmatpush.xpose.msra.mxu0 0.0
        %758 = vmatpush.xpose.msra.mxu0 0.0
        %759 = vmatpush.xpose.msra.mxu0 0.0
        %760 = vmatpush.xpose.msra.mxu0 0.0
        %761 = vmatpush.xpose.msra.mxu0 0.0
        %762 = vmatpush.xpose.msra.mxu0 0.0
        %763 = vmatpush.xpose.msra.mxu0 0.0
        %764 = vmatpush.xpose.msra.mxu0 0.0
        %765 = vmatpush.xpose.msra.mxu0 0.0
        %766 = vmatpush.xpose.msra.mxu0 0.0
        %767 = vmatpush.xpose.msra.mxu0 0.0
        %768 = vmatpush.xpose.msra.mxu0 0.0
        %769 = vmatpush.xpose.msra.mxu0 %v753
        %770 = vmatpush.xpose.msra.mxu0 %v750
        %771 = vmatmul.f32.gmra.mxu0 %v747
        %v772 = vpop.f32.mrf.mxu0
        %v773 = vadd.f32 0.0, %v772
        %774 = vdwg.mxu0
        %v775 = vmul.f32 %v742, %v742
        %v776 = vmul.f32 %v744, %v744
        %v777 = vsel %vm448, 1.0, 0
        %v780 = vsel %vm448, %v775, 0
        %v783 = vsel %vm448, %v776, 0
        %785 = vmatpush.xpose.msra.mxu0 0.0
        %786 = vmatpush.xpose.msra.mxu0 0.0
        %787 = vmatpush.xpose.msra.mxu0 0.0
        %788 = vmatpush.xpose.msra.mxu0 0.0
        %789 = vmatpush.xpose.msra.mxu0 0.0
        %790 = vmatpush.xpose.msra.mxu0 0.0
        %791 = vmatpush.xpose.msra.mxu0 0.0
        %792 = vmatpush.xpose.msra.mxu0 0.0
        %793 = vmatpush.xpose.msra.mxu0 0.0
        %794 = vmatpush.xpose.msra.mxu0 0.0
        %795 = vmatpush.xpose.msra.mxu0 0.0
        %796 = vmatpush.xpose.msra.mxu0 0.0
        %797 = vmatpush.xpose.msra.mxu0 0.0
        %798 = vmatpush.xpose.msra.mxu0 0.0
        %799 = vmatpush.xpose.msra.mxu0 %v783
        %800 = vmatpush.xpose.msra.mxu0 %v780
        %801 = vmatmul.f32.gmra.mxu0 %v777
        %v802 = vpop.f32.mrf.mxu0
        %v803 = vadd.f32 0.0, %v802
        %804 = vdwg.mxu0
        %v805 = vrsqrt.pop %v803
        %v806 = vmul.f32 %v805, %v803
        %v807 = vmul.f32 %v806, %v805
        %v808 = vmul.f32 0.5, %v807
        %v809 = vsub.f32 1.5, %v808
        %v810 = vmul.f32 %v805, %v809
        %v811 = vmul.f32 %v803, %v810
        %vm812 = vcmp.eq.f32.partialorder %v803, inf
        %v813 = vsel %vm812, %v803, %v811
        %vm814 = vcmp.eq.f32.partialorder %v803, 0.0
        %v815 = vand.u32 %v803, 2147483648
        %v816 = vsel %vm814, %v815, %v813
        %v817 = vmul.f32 %v773, %v816
        %vm818 = vcmask 122880
        %819 = vst.msk [vmem:[%s439] sm:$0x1] %vm818, %v817
        %s820 = sand.u32 %s254, 1
        %s821 = scalar_lea.sflag [#allocation4], %s820
        %s822 = sand.u32 %s254, 1
        %s823 = smul.addr %s822, 8
        %s824 = scalar_lea.vmem [#allocation8], %s823
        %s825 = sand.u32 %s280, 1
        %s826 = scalar_lea.sflag [#allocation10], %s825
        %s827 = sand.u32 %s280, 1
        %s828 = scalar_lea.vmem [#allocation9], %s827
        // Predicated region
        $region73: #{tpu_custom_call.1} parent=59 // pred_check
          %p829 = pneg %p264
        $region74: #{tpu_custom_call.1} parent=59 // pred_check_branch
          %831 = sbr.rel (%p829) target = $region76
        $region75: #{tpu_custom_call.1} parent=59 // pred_region
          %833 = vsyncadd %s821, 0
          %s834 = smul.addr %s31, 2
          %s835 = smul.addr %s834, 4
          %s836 = scalar_lea.hbm %s10, %s835
          %s837 = sshll.u32 %s824, 4
          %s838 = int_to_ptr.vmem [resolvable:$true] %s837
          %s839 = sshll.u32 %s836, 4
          %s840 = int_to_ptr.hbm [resolvable:$true] %s839
          %845 = dma.vmem_to_hbm [thread:$0]  %s838, 128, %s840, %s821, 64, 64, 4
        $region76: #{tpu_custom_call.1} parent=59 // pred_fallthru
          _
        // Predicated region
        $region77: #{tpu_custom_call.1} parent=59 // pred_check
          %p846 = pneg %p290
        $region78: #{tpu_custom_call.1} parent=59 // pred_check_branch
          %848 = sbr.rel (%p846) target = $region80
        $region79: #{tpu_custom_call.1} parent=59 // pred_region
          %850 = vsyncadd %s826, 0
          %s851 = scalar_lea.hbm %s11, %s31
          %s853 = sshll.u32 %s828, 4
          %s854 = int_to_ptr.vmem [resolvable:$true] %s853
          %s855 = sshll.u32 %s851, 4
          %s856 = int_to_ptr.hbm [resolvable:$true] %s855
          %858 = dma.vmem_to_hbm [thread:$0]  %s854, 16, %s856, %s826
        $region80: #{tpu_custom_call.1} parent=59 // pred_fallthru
          _
      $region60: #{tpu_custom_call.1} parent=5 // pred_fallthru
        _
      %p859 = scmp.le.s32.totalorder 2, %s26
      // Predicated region
      $region81: #{tpu_custom_call.1} parent=5 // pred_check
        %p860 = pneg %p859
      $region82: #{tpu_custom_call.1} parent=5 // pred_check_branch
        %862 = sbr.rel (%p860) target = $region84
      $region83: #{tpu_custom_call.1} parent=5 // pred_region
        %s863 = ssub.s32 %s26, 2
        // Predicated region
        $region85: #{tpu_custom_call.1} parent=83 // pred_check
          %p864 = pneg %p270
        $region86: #{tpu_custom_call.1} parent=83 // pred_check_branch
          %866 = sbr.rel (%p864) target = $region88
        $region87: #{tpu_custom_call.1} parent=83 // pred_region
          %s867 = sand.u32 %s255, 1
          %s868 = scalar_lea.sflag [#allocation4], %s867
          %s869 = sand.u32 %s255, 1
          %s870 = smul.addr %s869, 8
          %s871 = scalar_lea.vmem [#allocation8], %s870
          %873 = dma.done %s868, 128
        $region88: #{tpu_custom_call.1} parent=83 // pred_fallthru
          _
        // Predicated region
        $region89: #{tpu_custom_call.1} parent=83 // pred_check
          %p874 = pneg %p296
        $region90: #{tpu_custom_call.1} parent=83 // pred_check_branch
          %876 = sbr.rel (%p874) target = $region92
        $region91: #{tpu_custom_call.1} parent=83 // pred_region
          %s877 = sand.u32 %s281, 1
          %s878 = scalar_lea.sflag [#allocation10], %s877
          %s879 = sand.u32 %s281, 1
          %s880 = scalar_lea.vmem [#allocation9], %s879
          %882 = dma.done %s878, 16
        $region92: #{tpu_custom_call.1} parent=83 // pred_fallthru
          _
      $region84: #{tpu_custom_call.1} parent=5 // pred_fallthru
        _
    $region6: #{tpu_custom_call.1} parent=1 // loop_footer
      %s30 = sadd.s32 1, %s26
    $region7: #{tpu_custom_call.1} parent=1 // loop_footer_branch
      %25 = sbr.rel target = $region3
    $region8: #{tpu_custom_call.1} parent=1 // loop_exit
      _
    %883 = vsyncpa [#allocation3], 1
    %s884 = scalar_lea.sflag [#allocation3], 1
    %885 = vsyncpa %s884, 1
    %886 = vsyncpa [#allocation6], 1
    %887 = vsyncpa [#allocation4], 1
    %s888 = scalar_lea.sflag [#allocation4], 1
    %889 = vsyncpa %s888, 1
    %890 = vsyncpa [#allocation10], 1
    %s891 = scalar_lea.sflag [#allocation10], 1
    %892 = vsyncpa %s891, 1

</llo_original>
